<compile_context>
chip_gen: v7x
topology: tpu7x:2x2x1
jax: 0.10.0
libtpu: 0.0.40
codegen_flags: <defaults>
</compile_context>

<pallas_src>
import functools
import math

import jax
import jax.numpy as jnp
from jax.experimental import pallas as pl
from jax.experimental.pallas import tpu as pltpu


LANE = 128     # TPU lane width: output dim padded to a multiple of this
SUBLANE = 8    # f32 sublane packing: batch tile is a multiple of this


def _round_up(x, m):
    return (x + m - 1) // m * m


def drift_kernel(x_ref, wt_ref, b_ref, o_ref):
    """One batch tile of out = relu(x @ W^T + b).

    wt_ref holds W^T (K, N_pad) -> plain MXU dot, no in-kernel transpose.
    b_ref is (1, N_pad); the add broadcasts over rows on the VPU.
    """
    x = x_ref[...]
    w = wt_ref[...]
    if w.dtype != x.dtype:
        # bf16 weights (v6e/v7x): feed the MXU its native dtype; cheap VPU cast.
        x = x.astype(w.dtype)
    y = jnp.dot(x, w, preferred_element_type=jnp.float32)
    o_ref[...] = jnp.maximum(y + b_ref[...], 0.0).astype(o_ref.dtype)


def prepare_drift_params(weight, bias, param_dtype=None):
    """One-time layout transform (at param init, NOT per SDE step).

    weight: (out, in) torch Linear layout -> W^T of shape (in, n_pad); only
            the OUTPUT (lane) dim is zero-padded to 128 so stores stay
            lane-dense; K keeps its true size so x is fed unpadded.
    bias:   (n,) -> zero-padded (1, n_pad) f32 row (added after the f32 dot).
    Padded output columns have 0 weight + 0 bias -> relu gives exactly 0.
    param_dtype: optionally jnp.bfloat16 for the weight (native MXU dtype on
                 v6e/v7x, halves weight DMA/VMEM).
    """
    n_out, n_in = weight.shape
    n_pad = _round_up(n_out, LANE)
    w_dtype = weight.dtype if param_dtype is None else param_dtype
    wt = jnp.zeros((n_in, n_pad), w_dtype).at[:, :n_out].set(
        weight.T.astype(w_dtype))
    b = jnp.zeros((1, n_pad), jnp.float32).at[0, :n_out].set(
        bias.astype(jnp.float32))
    return wt, b


def _pick_batch_tile(batch, block_b):
    """Batch tile: multiple of 8 sublanes, >=2 grid blocks when batch > 8
    (so v7x's 2 TensorCores both get work), capped at block_b."""
    if batch <= SUBLANE:
        return batch                       # single block == full batch dim
    return min(_round_up(pl.cdiv(batch, 2), SUBLANE), block_b)


@functools.partial(jax.jit, static_argnames=("block_b", "slice_output"))
def drift_forward(x, wt_pad, b_pad, *, block_b=512, slice_output=True):
    """x: (B, n); wt_pad: (n, n_pad) = W^T (output dim padded); b_pad: (1, n_pad)."""
    B, n = x.shape
    k, n_pad = wt_pad.shape
    assert k == n, "weight / activation feature mismatch"

    tm = _pick_batch_tile(B, block_b)
    grid = (pl.cdiv(B, tm),)               # partial last tile handled by Pallas

    itm = x.dtype.itemsize
    cost = pl.CostEstimate(
        flops=2 * B * n * n_pad,
        transcendentals=0,
        bytes_accessed=(x.size * itm
                        + wt_pad.size * wt_pad.dtype.itemsize
                        + b_pad.size * b_pad.dtype.itemsize
                        + B * n_pad * itm),
    )

    # VMEM: double-buffered x/out tiles + (resident) W^T and bias, 4x headroom.
    # Lower bound at v5e's 16 MiB scoped default, cap below v7x's 64 MiB phys.
    vmem_need = (2 * tm * (n + n_pad) * itm
                 + 2 * n * n_pad * wt_pad.dtype.itemsize
                 + 2 * n_pad * b_pad.dtype.itemsize)
    vmem_limit = int(min(max(4 * vmem_need, 16 * 1024 * 1024), 64 * 1024 * 1024))

    out = pl.pallas_call(
        drift_kernel,
        out_shape=jax.ShapeDtypeStruct((B, n_pad), x.dtype),
        grid_spec=pltpu.PrefetchScalarGridSpec(
            num_scalar_prefetch=0,
            grid=grid,
            in_specs=[
                # x: tiled over batch only; last dim == full array dim (no K pad).
                pl.BlockSpec((tm, n), lambda i: (i, 0)),
                # W^T: same block every step -> stays resident in VMEM.
                pl.BlockSpec((n, n_pad), lambda i: (0, 0)),
                # bias: single lane-dense row, broadcast inside the kernel.
                pl.BlockSpec((1, n_pad), lambda i: (0, 0)),
            ],
            out_specs=pl.BlockSpec((tm, n_pad), lambda i: (i, 0)),
        ),
        compiler_params=pltpu.CompilerParams(
            # Independent batch blocks -> v7x's 2 TensorCores split the grid.
            dimension_semantics=("parallel",),
            vmem_limit_bytes=vmem_limit,
        ),
        cost_estimate=cost,
    )(x, wt_pad, b_pad)

    if slice_output:
        out = out[:, :n]   # padded cols are exactly 0; skip for chained calls
    return out


def init_drift_params(key, latent_nodes, dtype=jnp.float32):
    # Mimic torch.nn.Linear default init: U(-1/sqrt(in), 1/sqrt(in)).
    kw, kb = jax.random.split(key)
    bound = 1.0 / math.sqrt(latent_nodes)
    weight = jax.random.uniform(
        kw, (latent_nodes, latent_nodes), dtype, minval=-bound, maxval=bound)
    bias = jax.random.uniform(
        kb, (latent_nodes,), dtype, minval=-bound, maxval=bound)
    return weight, bias


if __name__ == "__main__":
    latent_nodes = 32
    batch = 8

    key = jax.random.PRNGKey(0)
    kx, kp = jax.random.split(key)
    x = jax.random.normal(kx, (batch, latent_nodes), dtype=jnp.float32)
    weight, bias = init_drift_params(kp, latent_nodes)

    ref = jnp.maximum(x @ weight.T + bias, 0.0)

    # f32 path (exact vs. reference).
    wt_pad, b_pad = prepare_drift_params(weight, bias)
    out = drift_forward(x, wt_pad, b_pad)
    jax.block_until_ready(out)
    assert out.shape == (batch, latent_nodes)
    assert jnp.allclose(out, ref, atol=1e-5, rtol=1e-5)

    # Non-multiple-of-8 batch: exercises the partial last tile (no host-side pad).
    x_odd = jax.random.normal(kx, (13, latent_nodes), dtype=jnp.float32)
    out_odd = drift_forward(x_odd, wt_pad, b_pad)
    jax.block_until_ready(out_odd)
    ref_odd = jnp.maximum(x_odd @ weight.T + bias, 0.0)
    assert out_odd.shape == (13, latent_nodes)
    assert jnp.allclose(out_odd, ref_odd, atol=1e-5, rtol=1e-5)

    # bf16-weight path (native MXU dtype on v6e/v7x), f32 accumulation.
    wt_bf16, b_f32 = prepare_drift_params(weight, bias, param_dtype=jnp.bfloat16)
    out_bf16 = drift_forward(x, wt_bf16, b_f32)
    jax.block_until_ready(out_bf16)
    assert jnp.allclose(out_bf16, ref, atol=5e-2, rtol=5e-2)

    print("KERNEL_OK")
</pallas_src>

<mosaic_0001>
module attributes {stable_mosaic.version = 11 : i64} {
  func.func @drift_kernel(%arg0: i32, %arg1: memref<8x32xf32, #tpu.memory_space<vmem>>, %arg2: memref<32x128xf32, #tpu.memory_space<vmem>>, %arg3: memref<1x128xf32, #tpu.memory_space<vmem>>, %arg4: memref<8x128xf32, #tpu.memory_space<vmem>>) attributes {dimension_semantics = [#tpu.dimension_semantics<parallel>], iteration_bounds = array<i64: 1>, scalar_prefetch = 0 : i64, scratch_operands = 0 : i64, tpu.core_type = #tpu.core_type<tc>, window_params = [{transform_indices = @transform_0, window_bounds = array<i64: 8, 32>}, {pipeline_mode = #tpu.pipeline_mode<synchronous>, transform_indices = @transform_1, window_bounds = array<i64: 32, 128>}, {pipeline_mode = #tpu.pipeline_mode<synchronous>, transform_indices = @transform_2, window_bounds = array<i64: 1, 128>}, {transform_indices = @transform_3, window_bounds = array<i64: 8, 128>}]} {
    %c0 = arith.constant 0 : index
    %c0_0 = arith.constant 0 : index
    %0 = vector.load %arg1[%c0, %c0_0] : memref<8x32xf32, #tpu.memory_space<vmem>>, vector<8x32xf32>
    %c0_1 = arith.constant 0 : index
    %c0_2 = arith.constant 0 : index
    %1 = vector.load %arg2[%c0_1, %c0_2] : memref<32x128xf32, #tpu.memory_space<vmem>>, vector<32x128xf32>
    %cst = arith.constant dense<0.000000e+00> : vector<8x128xf32>
    %2 = tpu.matmul %0, %1, %cst {dimension_numbers = #tpu.dot_dimension_numbers<[1], [0], [0], [1], [0, 0, 1, 1], [], []>} : vector<8x32xf32>, vector<32x128xf32>, vector<8x128xf32> -> vector<8x128xf32>
    %c0_3 = arith.constant 0 : index
    %c0_4 = arith.constant 0 : index
    %3 = vector.load %arg3[%c0_3, %c0_4] : memref<1x128xf32, #tpu.memory_space<vmem>>, vector<1x128xf32>
    %4 = vector.broadcast %3 : vector<1x128xf32> to vector<8x128xf32>
    %5 = arith.addf %2, %4 : vector<8x128xf32>
    %cst_5 = arith.constant 0.000000e+00 : f32
    %6 = vector.broadcast %cst_5 : f32 to vector<8x128xf32>
    %7 = arith.maximumf %5, %6 : vector<8x128xf32>
    %c0_6 = arith.constant 0 : index
    %c0_7 = arith.constant 0 : index
    %8 = vector.load %arg4[%c0_6, %c0_7] : memref<8x128xf32, #tpu.memory_space<vmem>>, vector<8x128xf32>
    tpu.vector_store %arg4[%c0_6, %c0_7], %7 {strides = array<i32>} : memref<8x128xf32, #tpu.memory_space<vmem>>, vector<8x128xf32>,
    return
  }
  func.func @transform_0(%arg0: i32) -> (i32, i32) {
    %c0_i32 = arith.constant 0 : i32
    %c0_i32_0 = arith.constant 0 : i32
    return %arg0, %c0_i32 : i32, i32
  }
  func.func @transform_1(%arg0: i32) -> (i32, i32) {
    %c0_i32 = arith.constant 0 : i32
    %c0_i32_0 = arith.constant 0 : i32
    %c0_i32_1 = arith.constant 0 : i32
    return %c0_i32, %c0_i32_0 : i32, i32
  }
  func.func @transform_2(%arg0: i32) -> (i32, i32) {
    %c0_i32 = arith.constant 0 : i32
    %c0_i32_0 = arith.constant 0 : i32
    %c0_i32_1 = arith.constant 0 : i32
    return %c0_i32, %c0_i32_0 : i32, i32
  }
  func.func @transform_3(%arg0: i32) -> (i32, i32) {
    %c0_i32 = arith.constant 0 : i32
    %c0_i32_0 = arith.constant 0 : i32
    return %arg0, %c0_i32 : i32, i32
  }
}

</mosaic_0001>

<llo_original>
// kernel: drift_forward.1
$region0: #{drift_forward.1}
  #allocation0 [shape = 'u32[]', space=smem, size = 0x4, offset = 0x4, fixed_abs, tag = 'smem constant byte address 0x4 - core index']
  #allocation1 [shape = 'u32[144,128]{1,0:T(1,128)}', space=vmem, size = 0x12000, scoped, tag = 'internal scratch']
  %s0 = inlined_call_operand.hbm [shape: f32[8,32], index: 0, kind: input, shape index: {}]
  %s1 = inlined_call_operand.hbm [shape: f32[32,128], index: 1, kind: input, shape index: {}]
  %s2 = inlined_call_operand.vmem [shape: f32[1,128], index: 2, kind: input, shape index: {}]
  %s3 = inlined_call_operand.hbm [shape: f32[8,128], index: 3, kind: output, shape index: {}]
  %s4 = sld [smem:[#allocation0]]
  $region30: #{drift_forward.1} parent=0
    _
  %s6 = ssub.s32 1, %s4
  %s7 = scalar_select 0, %s6, %s4
  $region1: #{drift_forward.1} parent=0
    #allocation2 [shape = 'u8[4096]{0}', space=vmem, size = 0x1000, scoped, tag = 'input window, operand 0, single buffered']
    #allocation3 [shape = 's32[1]{0}', space=sflag, size = 0x4, scoped, tag = 'scoped memory for drift_forward.1']
    #allocation4 [shape = 's32[1]{0}', space=sflag, size = 0x4, scoped, tag = 'scoped memory for drift_forward.1']
    #allocation5 [shape = 'u8[16384]{0}', space=vmem, size = 0x4000, scoped, tag = 'input window, operand 1, single buffered']
    #allocation6 [shape = 's32[1]{0}', space=sflag, size = 0x4, scoped, tag = 'scoped memory for drift_forward.1']
    #allocation7 [shape = 'u8[4096]{0}', space=vmem, size = 0x1000, scoped, tag = 'output window, operand 0, single buffered']
    %8 = vsyncpa [#allocation3], 0
    %9 = vsyncpa [#allocation6], 0
    %10 = vsyncpa [#allocation4], 0
    // Predicated region
    $region2: #{drift_forward.1} parent=1 // pred_check
      _
    $region3: #{drift_forward.1} parent=1 // pred_check_branch
      %12 = sbr.rel (0) target = $region5
    $region4: #{drift_forward.1} parent=1 // pred_region
      %s14 = ssub.s32 128, 128
      %15 = vsyncadd [#allocation3], %s14
      %s17 = sshll.u32 [#allocation2], 4
      %s18 = int_to_ptr.vmem [resolvable:$true] %s17
      %20 = dma.hbm_to_vmem [thread:$0]  %s0, 128, %s18, [#allocation3]
    $region5: #{drift_forward.1} parent=1 // pred_fallthru
      _
    // Predicated region
    $region6: #{drift_forward.1} parent=1 // pred_check
      _
    $region7: #{drift_forward.1} parent=1 // pred_check_branch
      %22 = sbr.rel (0) target = $region9
    $region8: #{drift_forward.1} parent=1 // pred_region
      %s24 = ssub.s32 512, 512
      %25 = vsyncadd [#allocation6], %s24
      %s26 = sshll.u32 [#allocation5], 4
      %s27 = int_to_ptr.vmem [resolvable:$true] %s26
      %32 = dma.hbm_to_vmem [thread:$0]  %s1, 512, %s27, [#allocation6], 128, 128, 8
    $region9: #{drift_forward.1} parent=1 // pred_fallthru
      _
    // Predicated region
    $region10: #{drift_forward.1} parent=1 // pred_check
      _
    $region11: #{drift_forward.1} parent=1 // pred_check_branch
      %34 = sbr.rel (0) target = $region13
    $region12: #{drift_forward.1} parent=1 // pred_region
      _
    $region13: #{drift_forward.1} parent=1 // pred_fallthru
      _
    // Predicated region
    $region14: #{drift_forward.1} parent=1 // pred_check
      _
    $region15: #{drift_forward.1} parent=1 // pred_check_branch
      %36 = sbr.rel (0) target = $region17
    $region16: #{drift_forward.1} parent=1 // pred_region
      %37 = dma.done [#allocation3], 128
    $region17: #{drift_forward.1} parent=1 // pred_fallthru
      _
    // Predicated region
    $region18: #{drift_forward.1} parent=1 // pred_check
      _
    $region19: #{drift_forward.1} parent=1 // pred_check_branch
      %39 = sbr.rel (0) target = $region21
    $region20: #{drift_forward.1} parent=1 // pred_region
      %40 = dma.done [#allocation6], 512
    $region21: #{drift_forward.1} parent=1 // pred_fallthru
      _
    %v41 = vld [vmem:[#allocation2] sm:$0xff]
    %v42 = vld [vmem:[#allocation5] sm:$0xff]
    %v43 = vld [vmem:[#allocation5 + $0x8] sm:$0xff]
    %v44 = vld [vmem:[#allocation5 + $0x10] sm:$0xff]
    %v45 = vld [vmem:[#allocation5 + $0x18] sm:$0xff]
    %v46 = vld [vmem:[%s2] sm:$0x1]
    %v48 = vlaneseq
    %v49 = vshrl.u32 %v48, 7
    %v50 = vsub.s32 0, %v49
    %v51 = vrot.slane %v46, %v50
    %vm53 = vcmask 261120
    %v55 = vsel %vm53, %v41, 0
    %57 = vmatprep.subr.mxu0 0.0
    %58 = vmatpush1.msra.mxu0 %v42
    %59 = vmatprep.subr.mxu0 0.0
    %60 = vmatpush1.msra.mxu0 %v43
    %61 = vmatprep.subr.mxu0 0.0
    %62 = vmatpush1.msra.mxu0 %v44
    %63 = vmatprep.subr.mxu0 0.0
    %64 = vmatpush1.msra.mxu0 %v45
    %65 = vmatprep.subr.mxu0 0.0
    %66 = vmatpush1.msra.mxu0 0.0
    %67 = vmatprep.subr.mxu0 0.0
    %68 = vmatpush1.msra.mxu0 0.0
    %69 = vmatprep.subr.mxu0 0.0
    %70 = vmatpush1.msra.mxu0 0.0
    %71 = vmatprep.subr.mxu0 0.0
    %72 = vmatpush1.msra.mxu0 0.0
    %73 = vmatprep.subr.mxu0 0.0
    %74 = vmatpush1.msra.mxu0 0.0
    %75 = vmatprep.subr.mxu0 0.0
    %76 = vmatpush1.msra.mxu0 0.0
    %77 = vmatprep.subr.mxu0 0.0
    %78 = vmatpush1.msra.mxu0 0.0
    %79 = vmatprep.subr.mxu0 0.0
    %80 = vmatpush1.msra.mxu0 0.0
    %81 = vmatprep.subr.mxu0 0.0
    %82 = vmatpush1.msra.mxu0 0.0
    %83 = vmatprep.subr.mxu0 0.0
    %84 = vmatpush1.msra.mxu0 0.0
    %85 = vmatprep.subr.mxu0 0.0
    %86 = vmatpush1.msra.mxu0 0.0
    %87 = vmatprep.subr.mxu0 0.0
    %88 = vmatpush1.msra.mxu0 0.0
    %89 = vmatprep.subr.mxu0 0.0
    %90 = vmatpush1.msra.mxu0 0.0
    %91 = vmatprep.subr.mxu0 0.0
    %92 = vmatpush1.msra.mxu0 0.0
    %93 = vmatprep.subr.mxu0 0.0
    %94 = vmatpush1.msra.mxu0 0.0
    %95 = vmatprep.subr.mxu0 0.0
    %96 = vmatpush1.msra.mxu0 0.0
    %97 = vmatprep.subr.mxu0 0.0
    %98 = vmatpush1.msra.mxu0 0.0
    %99 = vmatprep.subr.mxu0 0.0
    %100 = vmatpush1.msra.mxu0 0.0
    %101 = vmatprep.subr.mxu0 0.0
    %102 = vmatpush1.msra.mxu0 0.0
    %103 = vmatprep.subr.mxu0 0.0
    %104 = vmatpush1.msra.mxu0 0.0
    %105 = vmatprep.subr.mxu0 0.0
    %106 = vmatpush1.msra.mxu0 0.0
    %107 = vmatprep.subr.mxu0 0.0
    %108 = vmatpush1.msra.mxu0 0.0
    %109 = vmatprep.subr.mxu0 0.0
    %110 = vmatpush1.msra.mxu0 0.0
    %111 = vmatprep.subr.mxu0 0.0
    %112 = vmatpush1.msra.mxu0 0.0
    %113 = vmatprep.subr.mxu0 0.0
    %114 = vmatpush1.msra.mxu0 0.0
    %115 = vmatprep.subr.mxu0 0.0
    %116 = vmatpush1.msra.mxu0 0.0
    %117 = vmatprep.subr.mxu0 0.0
    %118 = vmatpush1.msra.mxu0 0.0
    %119 = vmatprep.subr.mxu0 0.0
    %120 = vmatpush1.msra.mxu0 0.0
    %121 = vmatprep.mubr.f32.mxu0 0.0
    %122 = vmatmul.mubr.f32.gmra.mrb[0].mxu0 %v55
    %v123 = vpop.f32.mrb[0].mxu0
    %v124 = vadd.f32 %v51, %v123
    %v125 = vpop.f32.mrb[0].mxu0
    %126 = vdwg.mxu0
    %v127 = vmax.f32 %v124, 0.0
    %128 = vst [vmem:[#allocation7] sm:$0xff] %v127
    // Predicated region
    $region22: #{drift_forward.1} parent=1 // pred_check
      _
    $region23: #{drift_forward.1} parent=1 // pred_check_branch
      %130 = sbr.rel (0) target = $region25
    $region24: #{drift_forward.1} parent=1 // pred_region
      %s132 = ssub.s32 128, 128
      %133 = vsyncadd [#allocation4], %s132
      %s135 = sshll.u32 [#allocation7], 4
      %s136 = int_to_ptr.vmem [resolvable:$true] %s135
      %138 = dma.vmem_to_hbm [thread:$0]  %s136, 128, %s3, [#allocation4]
    $region25: #{drift_forward.1} parent=1 // pred_fallthru
      _
    // Predicated region
    $region26: #{drift_forward.1} parent=1 // pred_check
      _
    $region27: #{drift_forward.1} parent=1 // pred_check_branch
      %140 = sbr.rel (0) target = $region29
    $region28: #{drift_forward.1} parent=1 // pred_region
      %141 = dma.done [#allocation4], 128
    $region29: #{drift_forward.1} parent=1 // pred_fallthru
      _
    %142 = vsyncpa [#allocation3], 1
    %143 = vsyncpa [#allocation6], 1
    %144 = vsyncpa [#allocation4], 1

</llo_original>
